<compile_context>
chip_gen: v6e
topology: v6e:2x2x1
jax: 0.10.0
libtpu: 0.0.40
codegen_flags: <defaults>
</compile_context>

<pallas_src>
import functools

import jax
import jax.numpy as jnp
import numpy as np
from jax import lax
from jax.experimental import pallas as pl
from jax.experimental.pallas import tpu as pltpu

LEAKY_SLOPE = 0.1    # TODO(synk): PyTorch default would be 0.01; helper class not provided.
USE_BF16 = True      # bf16 MXU operands, f32 accumulation.
IN_EPS = 1e-5


def _round_up(x, m):
    return ((x + m - 1) // m) * m


# ----------------------------------------------------------------------------
# Fused conv kernel: K-packed taps, L-chunked register accumulator,
# bias / (folded BN) / InstanceNorm / residual / LeakyReLU epilogue in-kernel.
# ----------------------------------------------------------------------------
def _conv_fused_kernel(x_ref, w_ref, b_ref, o_ref, *,
                       offs, chunk, n_chunks, do_in, do_res, do_act, slope,
                       res_off, Wp, OW1, Lout, stride, count, eps, use_bf16):
    # x_ref: (1, C, Ltot)   zero-padded, flattened (rolled) input, f32
    # w_ref: (1, OC, KK*C)  K-packed weights (bf16 or f32)
    # b_ref: (1, OC, 1)     bias (eval-BN folded by the wrapper), f32
    # o_ref: (1, OC, Lacc)  rolled stride-1 output
    w = w_ref[0]
    bias = b_ref[0]
    s_tot = 0.0
    ss_tot = 0.0
    for ci in range(n_chunks):
        base = ci * chunk
        pieces = []
        for off in offs:
            sl = x_ref[0, :, base + off: base + off + chunk]
            if use_bf16:
                sl = sl.astype(jnp.bfloat16)
            pieces.append(sl)
        patch = jnp.concatenate(pieces, axis=0)                  # (KK*C, chunk)
        acc = jnp.dot(w, patch, preferred_element_type=jnp.float32)
        acc = acc + bias
        if do_in:
            lane = lax.broadcasted_iota(jnp.int32, (1, chunk), 1) + base
            col = lane % Wp
            row = lane // Wp
            valid = (lane < Lout) & (col < OW1)
            if stride > 1:
                valid = valid & (col % stride == 0) & (row % stride == 0)
            m = valid.astype(jnp.float32)
            s_tot = s_tot + jnp.sum(acc * m, axis=1, keepdims=True)
            ss_tot = ss_tot + jnp.sum(acc * acc * m, axis=1, keepdims=True)
        else:
            if do_res:
                acc = acc + x_ref[0, :, base + res_off: base + res_off + chunk]
            if do_act:
                acc = jnp.where(acc >= 0, acc, slope * acc)
        o_ref[0, :, base:base + chunk] = acc

    if do_in:
        inv_cnt = 1.0 / float(count)
        mean = s_tot * inv_cnt
        var = ss_tot * inv_cnt - mean * mean
        inv = lax.rsqrt(var + eps)
        y = (o_ref[0] - mean) * inv
        if do_res:
            lacc = n_chunks * chunk
            y = y + x_ref[0, :, res_off:res_off + lacc]
        if do_act:
            y = jnp.where(y >= 0, y, slope * y)
        o_ref[0] = y


def conv2d_fused(x, w, b, *, stride=1, padding=0, dilation=1,
                 do_in=False, do_res=False, act=False,
                 use_bf16=USE_BF16, eps=IN_EPS, chunk=256):
    """NCHW conv in rolled lane-dense layout, one fused Pallas kernel per batch
    element.  w: (G, OC, IC, KH, KW) with G in {1, B} (per-batch weights), b: (G, OC)."""
    B, C0, H, W = x.shape
    G, OC, ICw, KH, KW = w.shape
    assert ICw == C0 and G in (1, B)

    # Pad input channels to a multiple of 16 so in-kernel sublane concat is aligned.
    C = _round_up(C0, 16)
    if C != C0:
        x = jnp.pad(x, ((0, 0), (0, C - C0), (0, 0), (0, 0)))
        w = jnp.pad(w, ((0, 0), (0, 0), (0, C - C0), (0, 0), (0, 0)))

    p, d = padding, dilation
    Hp, Wp = H + 2 * p, W + 2 * p
    OH1 = Hp - d * (KH - 1)                 # stride-1 output height
    OW1 = Wp - d * (KW - 1)                 # stride-1 output width
    Lout = OH1 * Wp
    Lacc = _round_up(Lout, chunk)
    n_chunks = Lacc // chunk
    max_off = (KH - 1) * d * Wp + (KW - 1) * d
    res_off = p * (Wp + 1)
    Ltot = _round_up(max(max(max_off, res_off) + Lacc, Hp * Wp), 128)

    xf = jnp.pad(x, ((0, 0), (0, 0), (p, p), (p, p))).reshape(B, C, Hp * Wp)
    xf = jnp.pad(xf, ((0, 0), (0, 0), (0, Ltot - Hp * Wp)))
    wp = jnp.transpose(w, (0, 1, 3, 4, 2)).reshape(G, OC, KH * KW * C)
    if use_bf16:
        wp = wp.astype(jnp.bfloat16)
    bias = b.reshape(G, OC, 1).astype(jnp.float32)
    offs = tuple(int(kh * d * Wp + kw * d)
                 for kh in range(KH) for kw in range(KW))

    OHs = -(-OH1 // stride)
    OWs = -(-OW1 // stride)
    count = OHs * OWs
    if do_res:
        assert OC == C and stride == 1

    w_map = (lambda bi: (bi, 0, 0)) if (G == B and G > 1) else (lambda bi: (0, 0, 0))

    kern = functools.partial(
        _conv_fused_kernel, offs=offs, chunk=chunk, n_chunks=n_chunks,
        do_in=do_in, do_res=do_res, do_act=bool(act), slope=LEAKY_SLOPE,
        res_off=res_off, Wp=Wp, OW1=OW1, Lout=Lout, stride=stride,
        count=count, eps=eps, use_bf16=use_bf16)

    out = pl.pallas_call(
        kern,
        out_shape=jax.ShapeDtypeStruct((B, OC, Lacc), jnp.float32),
        grid_spec=pltpu.PrefetchScalarGridSpec(
            num_scalar_prefetch=0,
            grid=(B,),
            in_specs=[
                pl.BlockSpec((1, C, Ltot), lambda bi: (bi, 0, 0)),
                pl.BlockSpec((1, OC, KH * KW * C), w_map),
                pl.BlockSpec((1, OC, 1), w_map),
            ],
            out_specs=pl.BlockSpec((1, OC, Lacc), lambda bi: (bi, 0, 0)),
        ),
        compiler_params=pltpu.CompilerParams(
            dimension_semantics=("parallel",)),
    )(xf, wp, bias)

    out = out[:, :, :Lout].reshape(B, OC, OH1, Wp)[:, :, :, :OW1]
    if stride > 1:
        # TODO(synk): stride via post-subsample of the stride-1 rolled result.
        out = out[:, :, ::stride, ::stride]
    return out


# ----------------------------------------------------------------------------
# Local-correlation kernel: mean-square decomposition + 8-row grouped stores.
# ----------------------------------------------------------------------------
def _localcorr_kernel(f2_ref, f1_ref, o_ref, *, offs_groups, chunk, n_chunks, inv_c):
    # f2_ref: (1, C, Lacc)  feature2 in rolled layout
    # f1_ref: (1, C, Ltot)  padded, flattened smoothed feature1
    # o_ref : (1, KKpad, Lacc)  per-offset mean-squared difference over channels
    f2 = f2_ref[0]
    f2sq = jnp.mean(jnp.square(f2), axis=0, keepdims=True)         # (1, Lacc)
    f1sq = jnp.mean(jnp.square(f1_ref[0]), axis=0, keepdims=True)  # (1, Ltot)
    for ci in range(n_chunks):
        base = ci * chunk
        f2c = f2[:, base:base + chunk]                              # (C, chunk)
        s2c = f2sq[:, base:base + chunk]                            # (1, chunk)
        for g, group in enumerate(offs_groups):
            rows = []
            for off in group:
                prod = f2c * f1_ref[0, :, base + off: base + off + chunk]
                rows.append(jnp.sum(prod, axis=0, keepdims=True))   # (1, chunk)
            cross = jnp.concatenate(rows, axis=0)                   # (8, chunk)
            s1rows = jnp.concatenate(
                [f1sq[:, base + off: base + off + chunk] for off in group], axis=0)
            o_ref[0, g * 8:(g + 1) * 8, base:base + chunk] = (
                s2c + s1rows - (2.0 * inv_c) * cross)


def pallas_localcorr(feat2, feat1_smooth, k=7, dilation=4, padding=12, chunk=256):
    """mean over C of (feat2 - shifted feat1_smooth)^2 for every kernel offset."""
    B, C, H, W = feat2.shape
    p, d = padding, dilation
    Hp, Wp = H + 2 * p, W + 2 * p
    Lout = H * Wp
    Lacc = _round_up(Lout, chunk)
    n_chunks = Lacc // chunk
    max_off = (k - 1) * d * Wp + (k - 1) * d
    Ltot = _round_up(max(max_off + Lacc, Hp * Wp), 128)
    KK = k * k
    KKpad = _round_up(KK, 8)

    f2r = jnp.pad(feat2, ((0, 0), (0, 0), (0, 0), (0, Wp - W))).reshape(B, C, Lout)
    f2r = jnp.pad(f2r, ((0, 0), (0, 0), (0, Lacc - Lout)))
    f1f = jnp.pad(feat1_smooth,
                  ((0, 0), (0, 0), (p, p), (p, p))).reshape(B, C, Hp * Wp)
    f1f = jnp.pad(f1f, ((0, 0), (0, 0), (0, Ltot - Hp * Wp)))
    offs = [int(kh * d * Wp + kw * d) for kh in range(k) for kw in range(k)]
    offs = offs + [offs[-1]] * (KKpad - KK)
    groups = tuple(tuple(offs[g * 8:(g + 1) * 8]) for g in range(KKpad // 8))

    kern = functools.partial(_localcorr_kernel, offs_groups=groups, chunk=chunk,
                             n_chunks=n_chunks, inv_c=1.0 / C)
    out = pl.pallas_call(
        kern,
        out_shape=jax.ShapeDtypeStruct((B, KKpad, Lacc), jnp.float32),
        grid_spec=pltpu.PrefetchScalarGridSpec(
            num_scalar_prefetch=0,
            grid=(B,),
            in_specs=[
                pl.BlockSpec((1, C, Lacc), lambda bi: (bi, 0, 0)),
                pl.BlockSpec((1, C, Ltot), lambda bi: (bi, 0, 0)),
            ],
            out_specs=pl.BlockSpec((1, KKpad, Lacc), lambda bi: (bi, 0, 0)),
        ),
        compiler_params=pltpu.CompilerParams(
            dimension_semantics=("parallel",)),
    )(f2r, f1f)
    return out[:, :KK, :Lout].reshape(B, KK, H, Wp)[:, :, :, :W]


# ----------------------------------------------------------------------------
# Conv block wrappers (eval-BN folding, per-batch weights for unshare towers)
# ----------------------------------------------------------------------------
def conv_block(p, x, *, stride=1, padding=1, dilation=1, norm=None, act=True, res=False):
    w, b = p['w'], p['b']
    if norm == 'bn':
        # TODO(synk): eval-mode BN fold assumes running_mean=0, running_var=1.
        s = p['bn_g'] / jnp.sqrt(1.0 + IN_EPS)
        w = w * s[:, None, None, None]
        b = b * s + p['bn_b']
        norm = None
    return conv2d_fused(x, w[None], b[None], stride=stride, padding=padding,
                        dilation=dilation, do_in=(norm == 'in'), do_res=res,
                        act=bool(act))


def feature_extractor_unshare_pair(layers1, layers2, src, tgt):
    """Both unshare towers in one pallas_call chain (B=2, per-batch weights)."""
    bsz = src.shape[0]
    x = jnp.concatenate([src, tgt], axis=0)
    dil = 1
    for i in range(len(layers1)):
        if i % 2 == 1:
            dil *= 2
        w = jnp.stack([layers1[i]['w'], layers2[i]['w']], axis=0)
        b = jnp.stack([layers1[i]['b'], layers2[i]['b']], axis=0)
        if bsz > 1:
            w = jnp.repeat(w, bsz, axis=0)
            b = jnp.repeat(b, bsz, axis=0)
        # ResConv2d: LeakyReLU(x + InstanceNorm(conv(x))) fused in one kernel
        x = conv2d_fused(x, w, b, stride=1, padding=dil, dilation=dil,
                         do_in=True, do_res=True, act=True)
    return x


def share_block(layers, x, dilation):
    x = conv_block(layers[0], x, stride=1, padding=dilation, dilation=dilation,
                   norm='in', act=True)
    x = conv_block(layers[1], x, stride=2, padding=dilation, dilation=dilation,
                   norm='in', act=True)
    return x


# ----------------------------------------------------------------------------
# Plain-JAX glue: gaussian blur, meshgrid, grid_sample, resize
# ----------------------------------------------------------------------------
def _gaussian_kernel1d(ksize, sigma):
    x = jnp.arange(ksize, dtype=jnp.float32) - (ksize // 2)
    g = jnp.exp(-(x ** 2) / (2.0 * sigma ** 2))
    return g / g.sum()


def gaussian_blur2d(x, ksize, sigma, border):
    k = _gaussian_kernel1d(ksize, sigma)
    mode = 'constant' if border == 'constant' else 'edge'
    r = ksize // 2
    xp = jnp.pad(x, ((0, 0), (0, 0), (0, 0), (r, r)), mode=mode)
    out = jnp.zeros_like(x)
    for i in range(ksize):
        out = out + k[i] * xp[:, :, :, i:i + x.shape[3]]
    xp = jnp.pad(out, ((0, 0), (0, 0), (r, r), (0, 0)), mode=mode)
    out2 = jnp.zeros_like(x)
    for i in range(ksize):
        out2 = out2 + k[i] * xp[:, :, i:i + x.shape[2], :]
    return out2


def create_meshgrid(H, W):
    ys = jnp.linspace(-1.0, 1.0, H, dtype=jnp.float32)
    xs = jnp.linspace(-1.0, 1.0, W, dtype=jnp.float32)
    gx, gy = jnp.meshgrid(xs, ys)
    return jnp.stack([gx, gy], axis=-1)[None]          # (1, H, W, 2)


def grid_sample(img, grid):
    """F.grid_sample: bilinear, zeros padding, align_corners=False."""
    B, C, H, W = img.shape
    x = grid[..., 0]
    y = grid[..., 1]
    ix = ((x + 1.0) * W - 1.0) * 0.5
    iy = ((y + 1.0) * H - 1.0) * 0.5
    ix0 = jnp.floor(ix).astype(jnp.int32)
    iy0 = jnp.floor(iy).astype(jnp.int32)
    ix1 = ix0 + 1
    iy1 = iy0 + 1
    wx1 = ix - ix0.astype(jnp.float32)
    wx0 = 1.0 - wx1
    wy1 = iy - iy0.astype(jnp.float32)
    wy0 = 1.0 - wy1

    def gather(img_b, iyc, ixc):
        valid = ((ixc >= 0) & (ixc < W) & (iyc >= 0) & (iyc < H)).astype(img_b.dtype)
        ixs = jnp.clip(ixc, 0, W - 1)
        iys = jnp.clip(iyc, 0, H - 1)
        v = img_b[:, iys, ixs]
        return v * valid[None]

    def sample_one(img_b, iy0b, ix0b, iy1b, ix1b, wy0b, wx0b, wy1b, wx1b):
        v00 = gather(img_b, iy0b, ix0b)
        v01 = gather(img_b, iy0b, ix1b)
        v10 = gather(img_b, iy1b, ix0b)
        v11 = gather(img_b, iy1b, ix1b)
        return (v00 * (wy0b * wx0b)[None] + v01 * (wy0b * wx1b)[None]
                + v10 * (wy1b * wx0b)[None] + v11 * (wy1b * wx1b)[None])

    return jax.vmap(sample_one)(img, iy0, ix0, iy1, ix1, wy0, wx0, wy1, wx1)


def resize_bilinear(x, h, w):
    B, C = x.shape[0], x.shape[1]
    return jax.image.resize(x, (B, C, h, w), method='bilinear')


# ----------------------------------------------------------------------------
# Parameter init (deterministic, synthetic)
# ----------------------------------------------------------------------------
def init_conv(key, ic, oc, k=3):
    k1, k2 = jax.random.split(key)
    std = 1.0 / np.sqrt(ic * k * k)
    return {
        'w': jax.random.normal(k1, (oc, ic, k, k), jnp.float32) * std,
        'b': jax.random.normal(k2, (oc,), jnp.float32) * std,
    }


def init_params(key):
    keys = iter(jax.random.split(key, 64))
    params = {}
    params['unshare1'] = [init_conv(next(keys), 64, 64) for _ in range(4)]
    params['unshare2'] = [init_conv(next(keys), 64, 64) for _ in range(4)]
    params['share1'] = [init_conv(next(keys), 64, 64) for _ in range(2)]
    params['share2'] = [init_conv(next(keys), 64, 64) for _ in range(2)]
    params['share3'] = [init_conv(next(keys), 64, 64) for _ in range(2)]

    def init_estimator(ic0):
        layers = []
        ic, oc = ic0, 64
        for _ in range(3):
            oc //= 2
            p = init_conv(next(keys), ic, oc)
            p['bn_g'] = jnp.ones((oc,), jnp.float32)
            p['bn_b'] = jnp.zeros((oc,), jnp.float32)
            layers.append(p)
            ic = oc
        layers.append(init_conv(next(keys), oc, 2))
        return layers

    def init_matcher():
        return {'pre': init_conv(next(keys), 64, 64),
                'fc1': init_conv(next(keys), 128, 128),
                'fc2': init_conv(next(keys), 128, 64),
                'est': init_estimator(64 + 49)}

    params['matcher1'] = init_matcher()
    params['matcher2'] = init_matcher()
    params['refiner'] = {'pre': init_conv(next(keys), 64, 64),
                         'fc1': init_conv(next(keys), 128, 128),
                         'fc2': init_conv(next(keys), 128, 64),
                         'est': init_estimator(64 + 2)}
    return params


# ----------------------------------------------------------------------------
# Network modules (forward only)
# ----------------------------------------------------------------------------
def disp_estimator(p, feat1, feat2, dilation):
    b, c, h, w = feat1.shape
    feat = jnp.concatenate([feat1, feat2], axis=0)
    feat = conv_block(p['pre'], feat, padding=dilation, dilation=dilation,
                      norm=None, act=False)
    feat1p, feat2p = feat[:b], feat[b:]
    scale = jnp.array([w - 1.0, h - 1.0], jnp.float32).reshape(1, 2, 1, 1)

    # feature-compressor branch
    f = conv_block(p['fc1'], jnp.concatenate([feat1p, feat2p], axis=1),
                   padding=1, norm=None, act=True)
    f = conv_block(p['fc2'], f, padding=1, norm=None, act=False)

    # local-correlation branch (decomposed, fused Pallas kernel)
    feat1_smooth = gaussian_blur2d(feat1p, 13, 3.0, 'constant')
    lc = pallas_localcorr(feat2p, feat1_smooth, k=7, dilation=4, padding=12)
    corr = jnp.concatenate([f, lc], axis=1)              # (b, 113, h, w)

    dil = 1
    for i in range(3):
        corr = conv_block(p['est'][i], corr, padding=dil, dilation=dil,
                          norm='bn', act=True)
        dil *= 2
    corr = conv_block(p['est'][3], corr, padding=1, norm=None, act=False)

    corr = gaussian_blur2d(corr, 13, 3.0, 'replicate')
    disp = jnp.clip(corr, -300.0, 300.0)
    return disp / scale


def disp_refiner(p, feat1, feat2, disp):
    b = feat1.shape[0]
    feat = jnp.concatenate([feat1, feat2], axis=0)
    feat = conv_block(p['pre'], feat, padding=1, norm=None, act=False)
    feat = jnp.concatenate([feat[:b], feat[b:]], axis=1)
    feat = conv_block(p['fc1'], feat, padding=1, norm=None, act=True)
    feat = conv_block(p['fc2'], feat, padding=1, norm=None, act=False)
    corr = jnp.concatenate([feat, disp], axis=1)
    dil = 1
    for i in range(3):
        corr = conv_block(p['est'][i], corr, padding=dil, dilation=dil,
                          norm='bn', act=True)
        dil *= 2
    delta = conv_block(p['est'][3], corr, padding=1, norm=None, act=False)
    return disp + delta


def match(params, feat11, feat12, feat21, feat22, feat31, feat32):
    h, w = feat11.shape[2], feat11.shape[3]
    scale = jnp.array([w - 1.0, h - 1.0], jnp.float32).reshape(1, 2, 1, 1)

    disp2_raw = disp_estimator(params['matcher2'], feat31, feat32, dilation=2)
    disp2 = resize_bilinear(disp2_raw, feat21.shape[2], feat21.shape[3])
    grid_down = create_meshgrid(feat21.shape[2], feat21.shape[3])
    feat21_w = grid_sample(feat21, grid_down + disp2.transpose(0, 2, 3, 1))

    disp1_raw = disp_estimator(params['matcher1'], feat21_w, feat22, dilation=4)
    disp1 = resize_bilinear(disp1_raw, h, w)
    disp2 = resize_bilinear(disp2, h, w)
    grid_full = create_meshgrid(h, w)
    feat11_w = grid_sample(feat11, grid_full + (disp1 + disp2).transpose(0, 2, 3, 1))

    disp_scaleup = (disp1 + disp2) * scale
    disp = disp_refiner(params['refiner'], feat11_w, feat12, disp_scaleup)
    disp = gaussian_blur2d(disp, 17, 5.0, 'replicate') / scale
    return disp, disp_scaleup / scale, disp2


def registration_net_forward(params, src, tgt):
    """type='ir2vis' path of registration_net.forward."""
    b, c, h, w = tgt.shape
    feat0 = feature_extractor_unshare_pair(params['unshare1'], params['unshare2'],
                                           src, tgt)
    feat1 = share_block(params['share1'], feat0, dilation=1)
    feat2 = share_block(params['share2'], feat1, dilation=2)
    feat3 = share_block(params['share3'], feat2, dilation=4)
    feat11, feat12 = feat1[:b], feat1[b:]
    feat21, feat22 = feat2[:b], feat2[b:]
    feat31, feat32 = feat3[:b], feat3[b:]

    disp_12, disp_12_d4, disp_12_d8 = match(params, feat11, feat12,
                                            feat21, feat22, feat31, feat32)
    t = jnp.concatenate([disp_12, disp_12_d4, disp_12_d8], axis=0)
    t = resize_bilinear(t, h, w)
    down2, down4, down8 = t[:b], t[b:2 * b], t[2 * b:]
    return {'ir2vis': down2, 'down2': down2, 'down4': down4, 'down8': down8}


# ----------------------------------------------------------------------------
# Self-tests: conv kernel vs lax.conv_general_dilated, localcorr vs direct ref
# ----------------------------------------------------------------------------
def _selftest():
    key = jax.random.PRNGKey(123)
    for (C, OC, H, W, s, d) in [(16, 8, 16, 16, 1, 2),
                                (16, 8, 16, 16, 2, 1),
                                (12, 8, 12, 12, 1, 1)]:
        kx, kw, kb, key = jax.random.split(key, 4)
        x = jax.random.normal(kx, (2, C, H, W), jnp.float32)
        w = jax.random.normal(kw, (OC, C, 3, 3), jnp.float32) * 0.1
        b = jax.random.normal(kb, (OC,), jnp.float32) * 0.1
        got = conv2d_fused(x, w[None], b[None], stride=s, padding=d, dilation=d,
                           use_bf16=False)
        ref = lax.conv_general_dilated(
            x, w, window_strides=(s, s), padding=((d, d), (d, d)),
            rhs_dilation=(d, d), dimension_numbers=('NCHW', 'OIHW', 'NCHW'),
            precision=lax.Precision.HIGHEST) + b.reshape(1, -1, 1, 1)
        np.testing.assert_allclose(np.asarray(got), np.asarray(ref),
                                   rtol=1e-3, atol=1e-3)

    k1, k2, key = jax.random.split(key, 3)
    f2 = jax.random.normal(k1, (1, 8, 8, 8), jnp.float32)
    f1 = jax.random.normal(k2, (1, 8, 8, 8), jnp.float32)
    got = pallas_localcorr(f2, f1, k=7, dilation=4, padding=12)
    f1p = jnp.pad(f1, ((0, 0), (0, 0), (12, 12), (12, 12)))
    refs = []
    for kh in range(7):
        for kw in range(7):
            sl = f1p[:, :, kh * 4:kh * 4 + 8, kw * 4:kw * 4 + 8]
            refs.append(jnp.mean((f2 - sl) ** 2, axis=1))
    ref = jnp.stack(refs, axis=1)
    np.testing.assert_allclose(np.asarray(got), np.asarray(ref),
                               rtol=1e-3, atol=1e-3)


# ----------------------------------------------------------------------------
if __name__ == "__main__":
    _selftest()

    key = jax.random.PRNGKey(0)
    k1, k2 = jax.random.split(key)
    B, C, H, W = 1, 64, 32, 32          # registration_net expects 64-channel inputs
    src = jax.random.normal(k1, (B, C, H, W), jnp.float32)
    tgt = jax.random.normal(k2, (B, C, H, W), jnp.float32)
    params = init_params(jax.random.PRNGKey(42))

    fwd = jax.jit(registration_net_forward)
    out = fwd(params, src, tgt)
    out = jax.tree_util.tree_map(jax.block_until_ready, out)
    assert out['ir2vis'].shape == (B, 2, H, W)
    assert out['down2'].shape == (B, 2, H, W)
    assert out['down4'].shape == (B, 2, H, W)
    assert out['down8'].shape == (B, 2, H, W)
    assert np.all(np.isfinite(np.asarray(out['ir2vis'])))
    print("KERNEL_OK")
</pallas_src>

<mosaic_0001>
module attributes {stable_mosaic.version = 11 : i64} {
  func.func @_conv_fused_kernel(%arg0: i32, %arg1: memref<1x16x640xf32, #tpu.memory_space<vmem>>, %arg2: memref<1x8x144xf32, #tpu.memory_space<vmem>>, %arg3: memref<1x8x1xf32, #tpu.memory_space<vmem>>, %arg4: memref<1x8x512xf32, #tpu.memory_space<vmem>>) attributes {dimension_semantics = [#tpu.dimension_semantics<parallel>], iteration_bounds = array<i64: 2>, scalar_prefetch = 0 : i64, scratch_operands = 0 : i64, tpu.core_type = #tpu.core_type<tc>, window_params = [{transform_indices = @transform_0, window_bounds = array<i64: 1, 16, 640>}, {pipeline_mode = #tpu.pipeline_mode<synchronous>, transform_indices = @transform_1, window_bounds = array<i64: 1, 8, 144>}, {pipeline_mode = #tpu.pipeline_mode<synchronous>, transform_indices = @transform_2, window_bounds = array<i64: 1, 8, 1>}, {transform_indices = @transform_3, window_bounds = array<i64: 1, 8, 512>}]} {
    %c0 = arith.constant 0 : index
    %c0_0 = arith.constant 0 : index
    %c0_1 = arith.constant 0 : index
    %0 = vector.load %arg2[%c0, %c0_0, %c0_1] : memref<1x8x144xf32, #tpu.memory_space<vmem>>, vector<1x8x144xf32>
    %1 = vector.shape_cast %0 : vector<1x8x144xf32> to vector<8x144xf32>
    %c0_2 = arith.constant 0 : index
    %c0_3 = arith.constant 0 : index
    %c0_4 = arith.constant 0 : index
    %2 = vector.load %arg3[%c0_2, %c0_3, %c0_4] : memref<1x8x1xf32, #tpu.memory_space<vmem>>, vector<1x8x1xf32>
    %3 = vector.shape_cast %2 : vector<1x8x1xf32> to vector<8x1xf32>
    %c0_5 = arith.constant 0 : index
    %c0_6 = arith.constant 0 : index
    %c0_7 = arith.constant 0 : index
    %4 = vector.load %arg1[%c0_5, %c0_6, %c0_7] : memref<1x16x640xf32, #tpu.memory_space<vmem>>, vector<1x16x256xf32>
    %5 = vector.shape_cast %4 : vector<1x16x256xf32> to vector<16x256xf32>
    %c0_8 = arith.constant 0 : index
    %c0_9 = arith.constant 0 : index
    %c2 = arith.constant 2 : index
    %6 = vector.load %arg1[%c0_8, %c0_9, %c2] : memref<1x16x640xf32, #tpu.memory_space<vmem>>, vector<1x16x256xf32>
    %7 = vector.shape_cast %6 : vector<1x16x256xf32> to vector<16x256xf32>
    %c0_10 = arith.constant 0 : index
    %c0_11 = arith.constant 0 : index
    %c4 = arith.constant 4 : index
    %8 = vector.load %arg1[%c0_10, %c0_11, %c4] : memref<1x16x640xf32, #tpu.memory_space<vmem>>, vector<1x16x256xf32>
    %9 = vector.shape_cast %8 : vector<1x16x256xf32> to vector<16x256xf32>
    %c0_12 = arith.constant 0 : index
    %c0_13 = arith.constant 0 : index
    %c40 = arith.constant 40 : index
    %10 = vector.load %arg1[%c0_12, %c0_13, %c40] : memref<1x16x640xf32, #tpu.memory_space<vmem>>, vector<1x16x256xf32>
    %11 = vector.shape_cast %10 : vector<1x16x256xf32> to vector<16x256xf32>
    %c0_14 = arith.constant 0 : index
    %c0_15 = arith.constant 0 : index
    %c42 = arith.constant 42 : index
    %12 = vector.load %arg1[%c0_14, %c0_15, %c42] : memref<1x16x640xf32, #tpu.memory_space<vmem>>, vector<1x16x256xf32>
    %13 = vector.shape_cast %12 : vector<1x16x256xf32> to vector<16x256xf32>
    %c0_16 = arith.constant 0 : index
    %c0_17 = arith.constant 0 : index
    %c44 = arith.constant 44 : index
    %14 = vector.load %arg1[%c0_16, %c0_17, %c44] : memref<1x16x640xf32, #tpu.memory_space<vmem>>, vector<1x16x256xf32>
    %15 = vector.shape_cast %14 : vector<1x16x256xf32> to vector<16x256xf32>
    %c0_18 = arith.constant 0 : index
    %c0_19 = arith.constant 0 : index
    %c80 = arith.constant 80 : index
    %16 = vector.load %arg1[%c0_18, %c0_19, %c80] : memref<1x16x640xf32, #tpu.memory_space<vmem>>, vector<1x16x256xf32>
    %17 = vector.shape_cast %16 : vector<1x16x256xf32> to vector<16x256xf32>
    %c0_20 = arith.constant 0 : index
    %c0_21 = arith.constant 0 : index
    %c82 = arith.constant 82 : index
    %18 = vector.load %arg1[%c0_20, %c0_21, %c82] : memref<1x16x640xf32, #tpu.memory_space<vmem>>, vector<1x16x256xf32>
    %19 = vector.shape_cast %18 : vector<1x16x256xf32> to vector<16x256xf32>
    %c0_22 = arith.constant 0 : index
    %c0_23 = arith.constant 0 : index
    %c84 = arith.constant 84 : index
    %20 = vector.load %arg1[%c0_22, %c0_23, %c84] : memref<1x16x640xf32, #tpu.memory_space<vmem>>, vector<1x16x256xf32>
    %21 = vector.shape_cast %20 : vector<1x16x256xf32> to vector<16x256xf32>
    %22 = tpu.concatenate %5, %7, %9, %11, %13, %15, %17, %19, %21 in 0 : vector<16x256xf32>, vector<16x256xf32>, vector<16x256xf32>, vector<16x256xf32>, vector<16x256xf32>, vector<16x256xf32>, vector<16x256xf32>, vector<16x256xf32>, vector<16x256xf32> -> vector<144x256xf32>
    %cst = arith.constant dense<0.000000e+00> : vector<8x256xf32>
    %23 = tpu.matmul %1, %22, %cst {dimension_numbers = #tpu.dot_dimension_numbers<[1], [0], [0], [1], [0, 0, 1, 1], [], []>} : vector<8x144xf32>, vector<144x256xf32>, vector<8x256xf32> -> vector<8x256xf32>
    %24 = vector.broadcast %3 : vector<8x1xf32> to vector<8x256xf32>
    %25 = arith.addf %23, %24 : vector<8x256xf32>
    %c0_24 = arith.constant 0 : index
    %c0_25 = arith.constant 0 : index
    %c0_26 = arith.constant 0 : index
    %26 = vector.load %arg4[%c0_24, %c0_25, %c0_26] : memref<1x8x512xf32, #tpu.memory_space<vmem>>, vector<1x8x256xf32>
    %27 = vector.shape_cast %26 : vector<1x8x256xf32> to vector<8x256xf32>
    %28 = vector.shape_cast %25 : vector<8x256xf32> to vector<1x8x256xf32>
    tpu.vector_store %arg4[%c0_24, %c0_25, %c0_26], %28 {strides = array<i32>} : memref<1x8x512xf32, #tpu.memory_space<vmem>>, vector<1x8x256xf32>,
    %c0_27 = arith.constant 0 : index
    %c0_28 = arith.constant 0 : index
    %c256 = arith.constant 256 : index
    %29 = vector.load %arg1[%c0_27, %c0_28, %c256] : memref<1x16x640xf32, #tpu.memory_space<vmem>>, vector<1x16x256xf32>
    %30 = vector.shape_cast %29 : vector<1x16x256xf32> to vector<16x256xf32>
    %c0_29 = arith.constant 0 : index
    %c0_30 = arith.constant 0 : index
    %c258 = arith.constant 258 : index
    %31 = vector.load %arg1[%c0_29, %c0_30, %c258] : memref<1x16x640xf32, #tpu.memory_space<vmem>>, vector<1x16x256xf32>
    %32 = vector.shape_cast %31 : vector<1x16x256xf32> to vector<16x256xf32>
    %c0_31 = arith.constant 0 : index
    %c0_32 = arith.constant 0 : index
    %c260 = arith.constant 260 : index
    %33 = vector.load %arg1[%c0_31, %c0_32, %c260] : memref<1x16x640xf32, #tpu.memory_space<vmem>>, vector<1x16x256xf32>
    %34 = vector.shape_cast %33 : vector<1x16x256xf32> to vector<16x256xf32>
    %c0_33 = arith.constant 0 : index
    %c0_34 = arith.constant 0 : index
    %c296 = arith.constant 296 : index
    %35 = vector.load %arg1[%c0_33, %c0_34, %c296] : memref<1x16x640xf32, #tpu.memory_space<vmem>>, vector<1x16x256xf32>
    %36 = vector.shape_cast %35 : vector<1x16x256xf32> to vector<16x256xf32>
    %c0_35 = arith.constant 0 : index
    %c0_36 = arith.constant 0 : index
    %c298 = arith.constant 298 : index
    %37 = vector.load %arg1[%c0_35, %c0_36, %c298] : memref<1x16x640xf32, #tpu.memory_space<vmem>>, vector<1x16x256xf32>
    %38 = vector.shape_cast %37 : vector<1x16x256xf32> to vector<16x256xf32>
    %c0_37 = arith.constant 0 : index
    %c0_38 = arith.constant 0 : index
    %c300 = arith.constant 300 : index
    %39 = vector.load %arg1[%c0_37, %c0_38, %c300] : memref<1x16x640xf32, #tpu.memory_space<vmem>>, vector<1x16x256xf32>
    %40 = vector.shape_cast %39 : vector<1x16x256xf32> to vector<16x256xf32>
    %c0_39 = arith.constant 0 : index
    %c0_40 = arith.constant 0 : index
    %c336 = arith.constant 336 : index
    %41 = vector.load %arg1[%c0_39, %c0_40, %c336] : memref<1x16x640xf32, #tpu.memory_space<vmem>>, vector<1x16x256xf32>
    %42 = vector.shape_cast %41 : vector<1x16x256xf32> to vector<16x256xf32>
    %c0_41 = arith.constant 0 : index
    %c0_42 = arith.constant 0 : index
    %c338 = arith.constant 338 : index
    %43 = vector.load %arg1[%c0_41, %c0_42, %c338] : memref<1x16x640xf32, #tpu.memory_space<vmem>>, vector<1x16x256xf32>
    %44 = vector.shape_cast %43 : vector<1x16x256xf32> to vector<16x256xf32>
    %c0_43 = arith.constant 0 : index
    %c0_44 = arith.constant 0 : index
    %c340 = arith.constant 340 : index
    %45 = vector.load %arg1[%c0_43, %c0_44, %c340] : memref<1x16x640xf32, #tpu.memory_space<vmem>>, vector<1x16x256xf32>
    %46 = vector.shape_cast %45 : vector<1x16x256xf32> to vector<16x256xf32>
    %47 = tpu.concatenate %30, %32, %34, %36, %38, %40, %42, %44, %46 in 0 : vector<16x256xf32>, vector<16x256xf32>, vector<16x256xf32>, vector<16x256xf32>, vector<16x256xf32>, vector<16x256xf32>, vector<16x256xf32>, vector<16x256xf32>, vector<16x256xf32> -> vector<144x256xf32>
    %cst_45 = arith.constant dense<0.000000e+00> : vector<8x256xf32>
    %48 = tpu.matmul %1, %47, %cst_45 {dimension_numbers = #tpu.dot_dimension_numbers<[1], [0], [0], [1], [0, 0, 1, 1], [], []>} : vector<8x144xf32>, vector<144x256xf32>, vector<8x256xf32> -> vector<8x256xf32>
    %49 = vector.broadcast %3 : vector<8x1xf32> to vector<8x256xf32>
    %50 = arith.addf %48, %49 : vector<8x256xf32>
    %c0_46 = arith.constant 0 : index
    %c0_47 = arith.constant 0 : index
    %c256_48 = arith.constant 256 : index
    %51 = vector.load %arg4[%c0_46, %c0_47, %c256_48] : memref<1x8x512xf32, #tpu.memory_space<vmem>>, vector<1x8x256xf32>
    %52 = vector.shape_cast %51 : vector<1x8x256xf32> to vector<8x256xf32>
    %53 = vector.shape_cast %50 : vector<8x256xf32> to vector<1x8x256xf32>
    tpu.vector_store %arg4[%c0_46, %c0_47, %c256_48], %53 {strides = array<i32>} : memref<1x8x512xf32, #tpu.memory_space<vmem>>, vector<1x8x256xf32>,
    return
  }
  func.func @transform_0(%arg0: i32) -> (i32, i32, i32) {
    %c0_i32 = arith.constant 0 : i32
    %c0_i32_0 = arith.constant 0 : i32
    %c0_i32_1 = arith.constant 0 : i32
    return %arg0, %c0_i32, %c0_i32_0 : i32, i32, i32
  }
  func.func @transform_1(%arg0: i32) -> (i32, i32, i32) {
    %c0_i32 = arith.constant 0 : i32
    %c0_i32_0 = arith.constant 0 : i32
    %c0_i32_1 = arith.constant 0 : i32
    %c0_i32_2 = arith.constant 0 : i32
    return %c0_i32, %c0_i32_0, %c0_i32_1 : i32, i32, i32
  }
  func.func @transform_2(%arg0: i32) -> (i32, i32, i32) {
    %c0_i32 = arith.constant 0 : i32
    %c0_i32_0 = arith.constant 0 : i32
    %c0_i32_1 = arith.constant 0 : i32
    %c0_i32_2 = arith.constant 0 : i32
    return %c0_i32, %c0_i32_0, %c0_i32_1 : i32, i32, i32
  }
  func.func @transform_3(%arg0: i32) -> (i32, i32, i32) {
    %c0_i32 = arith.constant 0 : i32
    %c0_i32_0 = arith.constant 0 : i32
    %c0_i32_1 = arith.constant 0 : i32
    return %arg0, %c0_i32, %c0_i32_0 : i32, i32, i32
  }
}

</mosaic_0001>

<llo_original>
// kernel: tpu_custom_call.1
$region0: #{tpu_custom_call.1}
  #allocation0 [shape = 'u32[]', space=smem, size = 0x4, offset = 0x4, fixed_abs, tag = 'smem constant byte address 0x4 - core index']
  #allocation1 [shape = 'u32[144,128]{1,0:T(1,128)}', space=vmem, size = 0x12000, scoped, tag = 'internal scratch']
  %s0 = inlined_call_operand.hbm [shape: f32[2,16,640], index: 0, kind: input, shape index: {}]
  %s1 = inlined_call_operand.hbm [shape: f32[1,8,144], index: 1, kind: input, shape index: {}]
  %s2 = inlined_call_operand.vmem [shape: f32[1,8,1], index: 2, kind: input, shape index: {}]
  %s3 = inlined_call_operand.hbm [shape: f32[2,8,512], index: 3, kind: output, shape index: {}]
  %s4 = sld [smem:[#allocation0]]
  $region53: #{tpu_custom_call.1} parent=0
    _
  %s6 = ssub.s32 1, %s4
  %s7 = scalar_select 0, %s6, %s4
  $region1: #{tpu_custom_call.1} parent=0
    #allocation2 [shape = 'u8[81920]{0}', space=vmem, size = 0x14000, scoped, tag = 'input window, operand 0']
    #allocation3 [shape = 's32[2]{0}', space=sflag, size = 0x8, scoped, tag = 'scoped memory for tpu_custom_call.1']
    #allocation4 [shape = 's32[2]{0}', space=sflag, size = 0x8, scoped, tag = 'scoped memory for tpu_custom_call.1']
    #allocation5 [shape = 'u8[8192]{0}', space=vmem, size = 0x2000, scoped, tag = 'input window, operand 1, single buffered']
    #allocation6 [shape = 's32[1]{0}', space=sflag, size = 0x4, scoped, tag = 'scoped memory for tpu_custom_call.1']
    #allocation7 [shape = 'u8[32768]{0}', space=vmem, size = 0x8000, scoped, tag = 'output window, operand 0']
    %8 = vsyncpa [#allocation3], 0
    %s9 = scalar_lea.sflag [#allocation3], 1
    %10 = vsyncpa %s9, 0
    %11 = vsyncpa [#allocation6], 0
    %12 = vsyncpa [#allocation4], 0
    %s13 = scalar_lea.sflag [#allocation4], 1
    %14 = vsyncpa %s13, 0
    loop: start=0, step=1, limit=4
    $region2: #{tpu_custom_call.1} parent=1 // loop_pre_header
      _
    $region3: #{tpu_custom_call.1} parent=1 // loop_header
      %s16 = sphi 0, %s20
      %p17 = scmp.ge.s32.totalorder %s16, 4
      %s26 = sphi 0, %s28
      %s29 = sphi 0, %s26
      %s30 = sphi 0, %s29
      %s46 = sphi 0, %s30
      %s50 = sphi 0, %s50
      %s52 = sphi 0, %s50
      %s53 = sphi 0, %s52
      %s67 = sphi 0, %s53
      %s71 = sphi 0, %s71
      %s73 = sphi 0, %s71
      %s74 = sphi 0, %s73
      %s88 = sphi 0, %s74
      %s94 = sphi 0, %s96
      %s97 = sphi 0, %s94
      %s98 = sphi 0, %s97
      %s114 = sphi 0, %s98
    $region4: #{tpu_custom_call.1} parent=1 // loop_header_branch
      %19 = sbr.rel (%p17) target = $region8
    $region5: #{tpu_custom_call.1} parent=1 // loop_body
      %s21 = ssub.s32 %s16, 1
      %s22 = ssub.s32 %s16, 2
      %s23 = sadd.s32 %s16, 1
      %s24 = ssub.s32 %s16, %s23
      %p25 = scmp.eq.s32.totalorder %s24, 0
      %s27 = sadd.s32 %s26, 1
      %s28 = scalar_select %p25, %s26, %s27
      %p31 = pneg %p25
      %p32 = scmp.eq.s32.totalorder %s16, 1
      %p33 = por %p31, %p32
      %p34 = scmp.ne.s32.totalorder %s26, %s29
      %p35 = scmp.eq.s32.totalorder %s16, 0
      %p36 = por %p34, %p35
      %p37 = scmp.ne.s32.totalorder %s26, %s29
      %p38 = scmp.eq.s32.totalorder %s21, 1
      %p39 = por %p37, %p38
      %p40 = scmp.ne.s32.totalorder %s29, %s30
      %p41 = scmp.eq.s32.totalorder %s21, 0
      %p42 = por %p40, %p41
      %p43 = scmp.ne.s32.totalorder %s29, %s30
      %p44 = scmp.eq.s32.totalorder %s22, 1
      %p45 = por %p43, %p44
      %p47 = scmp.ne.s32.totalorder %s30, %s46
      %p48 = scmp.eq.s32.totalorder %s22, 0
      %p49 = por %p47, %p48
      %s51 = sadd.s32 %s50, 1
      %p54 = scmp.eq.s32.totalorder %s16, 1
      %p55 = scmp.ne.s32.totalorder %s50, %s52
      %p56 = scmp.eq.s32.totalorder %s16, 0
      %p57 = por %p55, %p56
      %p58 = scmp.ne.s32.totalorder %s50, %s52
      %p59 = scmp.eq.s32.totalorder %s21, 1
      %p60 = por %p58, %p59
      %p61 = scmp.ne.s32.totalorder %s52, %s53
      %p62 = scmp.eq.s32.totalorder %s21, 0
      %p63 = por %p61, %p62
      %p64 = scmp.ne.s32.totalorder %s52, %s53
      %p65 = scmp.eq.s32.totalorder %s22, 1
      %p66 = por %p64, %p65
      %p68 = scmp.ne.s32.totalorder %s53, %s67
      %p69 = scmp.eq.s32.totalorder %s22, 0
      %p70 = por %p68, %p69
      %s72 = sadd.s32 %s71, 1
      %p75 = scmp.eq.s32.totalorder %s16, 1
      %p76 = scmp.ne.s32.totalorder %s71, %s73
      %p77 = scmp.eq.s32.totalorder %s16, 0
      %p78 = por %p76, %p77
      %p79 = scmp.ne.s32.totalorder %s71, %s73
      %p80 = scmp.eq.s32.totalorder %s21, 1
      %p81 = por %p79, %p80
      %p82 = scmp.ne.s32.totalorder %s73, %s74
      %p83 = scmp.eq.s32.totalorder %s21, 0
      %p84 = por %p82, %p83
      %p85 = scmp.ne.s32.totalorder %s73, %s74
      %p86 = scmp.eq.s32.totalorder %s22, 1
      %p87 = por %p85, %p86
      %p89 = scmp.ne.s32.totalorder %s74, %s88
      %p90 = scmp.eq.s32.totalorder %s22, 0
      %p91 = por %p89, %p90
      %s92 = ssub.s32 %s16, %s23
      %p93 = scmp.eq.s32.totalorder %s92, 0
      %s95 = sadd.s32 %s94, 1
      %s96 = scalar_select %p93, %s94, %s95
      %p99 = pneg %p93
      %p100 = scmp.eq.s32.totalorder %s16, 1
      %p101 = por %p99, %p100
      %p102 = scmp.ne.s32.totalorder %s94, %s97
      %p103 = scmp.eq.s32.totalorder %s16, 0
      %p104 = por %p102, %p103
      %p105 = scmp.ne.s32.totalorder %s94, %s97
      %p106 = scmp.eq.s32.totalorder %s21, 1
      %p107 = por %p105, %p106
      %p108 = scmp.ne.s32.totalorder %s97, %s98
      %p109 = scmp.eq.s32.totalorder %s21, 0
      %p110 = por %p108, %p109
      %p111 = scmp.ne.s32.totalorder %s97, %s98
      %p112 = scmp.eq.s32.totalorder %s22, 1
      %p113 = por %p111, %p112
      %p115 = scmp.ne.s32.totalorder %s98, %s114
      %p116 = scmp.eq.s32.totalorder %s22, 0
      %p117 = por %p115, %p116
      %p118 = scmp.le.s32.totalorder 1, %s16
      %p119 = scmp.lt.s32.totalorder %s16, 3
      %p120 = pnand %p118, %p119
      %p121 = pneg %p120
      // Predicated region
      $region9: #{tpu_custom_call.1} parent=5 // pred_check
        _
      $region10: #{tpu_custom_call.1} parent=5 // pred_check_branch
        %123 = sbr.rel (%p120) target = $region12
      $region11: #{tpu_custom_call.1} parent=5 // pred_region
        %s124 = ssub.s32 %s16, 1
        // Predicated region
        $region13: #{tpu_custom_call.1} parent=11 // pred_check
          %p125 = pneg %p63
        $region14: #{tpu_custom_call.1} parent=11 // pred_check_branch
          %127 = sbr.rel (%p125) target = $region16
        $region15: #{tpu_custom_call.1} parent=11 // pred_region
          %s129 = ssub.s32 256, 256
          %130 = vsyncadd [#allocation6], %s129
          %s132 = sshll.u32 [#allocation5], 4
          %s133 = int_to_ptr.vmem [resolvable:$true] %s132
          %135 = dma.hbm_to_vmem [thread:$0]  %s1, 256, %s133, [#allocation6]
        $region16: #{tpu_custom_call.1} parent=11 // pred_fallthru
          _
        // Predicated region
        $region17: #{tpu_custom_call.1} parent=11 // pred_check
          %p136 = pneg %p84
        $region18: #{tpu_custom_call.1} parent=11 // pred_check_branch
          %138 = sbr.rel (%p136) target = $region20
        $region19: #{tpu_custom_call.1} parent=11 // pred_region
          _
        $region20: #{tpu_custom_call.1} parent=11 // pred_fallthru
          _
      $region12: #{tpu_custom_call.1} parent=5 // pred_fallthru
        _
      %p139 = scmp.lt.s32.totalorder %s16, 2
      // Predicated region
      $region21: #{tpu_custom_call.1} parent=5 // pred_check
        %p140 = pneg %p139
      $region22: #{tpu_custom_call.1} parent=5 // pred_check_branch
        %142 = sbr.rel (%p140) target = $region24
      $region23: #{tpu_custom_call.1} parent=5 // pred_region
        // Predicated region
        $region25: #{tpu_custom_call.1} parent=23 // pred_check
          %p143 = pneg %p36
        $region26: #{tpu_custom_call.1} parent=23 // pred_check_branch
          %145 = sbr.rel (%p143) target = $region28
        $region27: #{tpu_custom_call.1} parent=23 // pred_region
          %s146 = sand.u32 %s26, 1
          %s147 = scalar_lea.sflag [#allocation3], %s146
          %s148 = sand.u32 %s26, 1
          %s149 = smul.addr %s148, 80
          %s150 = scalar_lea.vmem [#allocation2], %s149
          %s152 = ssub.s32 1280, 1280
          %153 = vsyncadd %s147, %s152
          %s154 = smul.addr %s16, 10
          %s155 = smul.addr %s154, 128
          %s156 = scalar_lea.hbm %s0, %s155
          %s157 = sshll.u32 %s150, 4
          %s158 = int_to_ptr.vmem [resolvable:$true] %s157
          %163 = dma.hbm_to_vmem [thread:$0]  %s156, 1280, %s158, %s147, 640, 640, 40
        $region28: #{tpu_custom_call.1} parent=23 // pred_fallthru
          _
      $region24: #{tpu_custom_call.1} parent=5 // pred_fallthru
        _
      %p164 = scmp.le.s32.totalorder 1, %s16
      %p165 = scmp.lt.s32.totalorder %s16, 3
      %p166 = pnand %p164, %p165
      %p167 = pneg %p166
      // Predicated region
      $region29: #{tpu_custom_call.1} parent=5 // pred_check
        _
      $region30: #{tpu_custom_call.1} parent=5 // pred_check_branch
        %169 = sbr.rel (%p166) target = $region32
      $region31: #{tpu_custom_call.1} parent=5 // pred_region
        %s170 = ssub.s32 %s16, 1
        %s171 = sand.u32 %s29, 1
        %s172 = scalar_lea.sflag [#allocation3], %s171
        %s173 = sand.u32 %s29, 1
        %s174 = smul.addr %s173, 80
        %s175 = scalar_lea.vmem [#allocation2], %s174
        // Predicated region
        $region33: #{tpu_custom_call.1} parent=31 // pred_check
          %p176 = pneg %p42
        $region34: #{tpu_custom_call.1} parent=31 // pred_check_branch
          %178 = sbr.rel (%p176) target = $region36
        $region35: #{tpu_custom_call.1} parent=31 // pred_region
          %179 = dma.done %s172, 1280
        $region36: #{tpu_custom_call.1} parent=31 // pred_fallthru
          _
        // Predicated region
        $region37: #{tpu_custom_call.1} parent=31 // pred_check
          %p180 = pneg %p63
        $region38: #{tpu_custom_call.1} parent=31 // pred_check_branch
          %182 = sbr.rel (%p180) target = $region40
        $region39: #{tpu_custom_call.1} parent=31 // pred_region
          %183 = dma.done [#allocation6], 256
        $region40: #{tpu_custom_call.1} parent=31 // pred_fallthru
          _
        %s184 = sand.u32 %s29, 1
        %s185 = scalar_lea.sflag [#allocation3], %s184
        %s186 = sand.u32 %s29, 1
        %s187 = smul.addr %s186, 80
        %s188 = scalar_lea.vmem [#allocation2], %s187
        %p189 = pneg %p42
        %p190 = pneg %p39
        %p191 = pneg %p63
        %p192 = pneg %p60
        %p193 = pneg %p84
        %p194 = pneg %p81
        %p195 = pneg %p110
        %p196 = pneg %p107
        %s197 = sand.u32 %s97, 1
        %s198 = scalar_lea.sflag [#allocation4], %s197
        %s199 = sand.u32 %s97, 1
        %s200 = smul.addr %s199, 32
        %s201 = scalar_lea.vmem [#allocation7], %s200
        %v202 = vld [vmem:[#allocation5] sm:$0xff]
        %v203 = vld [vmem:[#allocation5 + $0x8] sm:$0xff]
        %v204 = vld [vmem:[%s2] sm:$0xff]
        %v205 = vld [vmem:[%s175] sm:$0xff]
        %v206 = vld [vmem:[%s175 + $0x8] sm:$0xff]
        %v207 = vld [vmem:[%s175 + $0x28] sm:$0xff]
        %v208 = vld [vmem:[%s175 + $0x30] sm:$0xff]
        %v209 = vld [vmem:[%s175 + $0x10] sm:$0xff]
        %v210 = vld [vmem:[%s175 + $0x38] sm:$0xff]
        %217 = vrot.lane.b32.xlu0 %v205, 126
        %v218 = vpop.permute.xlu0 %217
        %219 = vrot.lane.b32.xlu0 %v206, 126
        %v220 = vpop.permute.xlu0 %219
        %221 = vrot.lane.b32.xlu0 %v209, 126
        %v222 = vpop.permute.xlu0 %221
        %223 = vrot.lane.b32.xlu0 %v207, 126
        %v224 = vpop.permute.xlu0 %223
        %225 = vrot.lane.b32.xlu0 %v208, 126
        %v226 = vpop.permute.xlu0 %225
        %227 = vrot.lane.b32.xlu0 %v210, 126
        %v228 = vpop.permute.xlu0 %227
        %vm229 = vcmask 1031168
        %v230 = vsel %vm229, %v218, %v220
        %v231 = vsel %vm229, %v220, %v222
        %v232 = vsel %vm229, %v224, %v226
        %v233 = vsel %vm229, %v226, %v228
        %238 = vrot.lane.b32.xlu0 %v205, 124
        %v239 = vpop.permute.xlu0 %238
        %240 = vrot.lane.b32.xlu0 %v206, 124
        %v241 = vpop.permute.xlu0 %240
        %242 = vrot.lane.b32.xlu0 %v209, 124
        %v243 = vpop.permute.xlu0 %242
        %244 = vrot.lane.b32.xlu0 %v207, 124
        %v245 = vpop.permute.xlu0 %244
        %246 = vrot.lane.b32.xlu0 %v208, 124
        %v247 = vpop.permute.xlu0 %246
        %248 = vrot.lane.b32.xlu0 %v210, 124
        %v249 = vpop.permute.xlu0 %248
        %vm250 = vcmask 1014784
        %v251 = vsel %vm250, %v239, %v241
        %v252 = vsel %vm250, %v241, %v243
        %v253 = vsel %vm250, %v245, %v247
        %v254 = vsel %vm250, %v247, %v249
        %259 = vrot.lane.b32.xlu0 %v205, 88
        %v260 = vpop.permute.xlu0 %259
        %261 = vrot.lane.b32.xlu0 %v206, 88
        %v262 = vpop.permute.xlu0 %261
        %263 = vrot.lane.b32.xlu0 %v209, 88
        %v264 = vpop.permute.xlu0 %263
        %265 = vrot.lane.b32.xlu0 %v207, 88
        %v266 = vpop.permute.xlu0 %265
        %267 = vrot.lane.b32.xlu0 %v208, 88
        %v268 = vpop.permute.xlu0 %267
        %269 = vrot.lane.b32.xlu0 %v210, 88
        %v270 = vpop.permute.xlu0 %269
        %vm271 = vcmask 719872
        %v272 = vsel %vm271, %v260, %v262
        %v273 = vsel %vm271, %v262, %v264
        %v274 = vsel %vm271, %v266, %v268
        %v275 = vsel %vm271, %v268, %v270
        %280 = vrot.lane.b32.xlu0 %v205, 86
        %v281 = vpop.permute.xlu0 %280
        %282 = vrot.lane.b32.xlu0 %v206, 86
        %v283 = vpop.permute.xlu0 %282
        %284 = vrot.lane.b32.xlu0 %v209, 86
        %v285 = vpop.permute.xlu0 %284
        %286 = vrot.lane.b32.xlu0 %v207, 86
        %v287 = vpop.permute.xlu0 %286
        %288 = vrot.lane.b32.xlu0 %v208, 86
        %v289 = vpop.permute.xlu0 %288
        %290 = vrot.lane.b32.xlu0 %v210, 86
        %v291 = vpop.permute.xlu0 %290
        %vm292 = vcmask 703488
        %v293 = vsel %vm292, %v281, %v283
        %v294 = vsel %vm292, %v283, %v285
        %v295 = vsel %vm292, %v287, %v289
        %v296 = vsel %vm292, %v289, %v291
        %301 = vrot.lane.b32.xlu0 %v205, 84
        %v302 = vpop.permute.xlu0 %301
        %303 = vrot.lane.b32.xlu0 %v206, 84
        %v304 = vpop.permute.xlu0 %303
        %305 = vrot.lane.b32.xlu0 %v209, 84
        %v306 = vpop.permute.xlu0 %305
        %307 = vrot.lane.b32.xlu0 %v207, 84
        %v308 = vpop.permute.xlu0 %307
        %309 = vrot.lane.b32.xlu0 %v208, 84
        %v310 = vpop.permute.xlu0 %309
        %311 = vrot.lane.b32.xlu0 %v210, 84
        %v312 = vpop.permute.xlu0 %311
        %vm313 = vcmask 687104
        %v314 = vsel %vm313, %v302, %v304
        %v315 = vsel %vm313, %v304, %v306
        %v316 = vsel %vm313, %v308, %v310
        %v317 = vsel %vm313, %v310, %v312
        %322 = vrot.lane.b32.xlu0 %v205, 48
        %v323 = vpop.permute.xlu0 %322
        %324 = vrot.lane.b32.xlu0 %v206, 48
        %v325 = vpop.permute.xlu0 %324
        %326 = vrot.lane.b32.xlu0 %v209, 48
        %v327 = vpop.permute.xlu0 %326
        %328 = vrot.lane.b32.xlu0 %v207, 48
        %v329 = vpop.permute.xlu0 %328
        %330 = vrot.lane.b32.xlu0 %v208, 48
        %v331 = vpop.permute.xlu0 %330
        %332 = vrot.lane.b32.xlu0 %v210, 48
        %v333 = vpop.permute.xlu0 %332
        %vm334 = vcmask 392192
        %v335 = vsel %vm334, %v323, %v325
        %v336 = vsel %vm334, %v325, %v327
        %v337 = vsel %vm334, %v329, %v331
        %v338 = vsel %vm334, %v331, %v333
        %343 = vrot.lane.b32.xlu0 %v205, 46
        %v344 = vpop.permute.xlu0 %343
        %345 = vrot.lane.b32.xlu0 %v206, 46
        %v346 = vpop.permute.xlu0 %345
        %347 = vrot.lane.b32.xlu0 %v209, 46
        %v348 = vpop.permute.xlu0 %347
        %349 = vrot.lane.b32.xlu0 %v207, 46
        %v350 = vpop.permute.xlu0 %349
        %351 = vrot.lane.b32.xlu0 %v208, 46
        %v352 = vpop.permute.xlu0 %351
        %353 = vrot.lane.b32.xlu0 %v210, 46
        %v354 = vpop.permute.xlu0 %353
        %vm355 = vcmask 375808
        %v356 = vsel %vm355, %v344, %v346
        %v357 = vsel %vm355, %v346, %v348
        %v358 = vsel %vm355, %v350, %v352
        %v359 = vsel %vm355, %v352, %v354
        %364 = vrot.lane.b32.xlu0 %v205, 44
        %v365 = vpop.permute.xlu0 %364
        %366 = vrot.lane.b32.xlu0 %v206, 44
        %v367 = vpop.permute.xlu0 %366
        %368 = vrot.lane.b32.xlu0 %v209, 44
        %v369 = vpop.permute.xlu0 %368
        %370 = vrot.lane.b32.xlu0 %v207, 44
        %v371 = vpop.permute.xlu0 %370
        %372 = vrot.lane.b32.xlu0 %v208, 44
        %v373 = vpop.permute.xlu0 %372
        %374 = vrot.lane.b32.xlu0 %v210, 44
        %v375 = vpop.permute.xlu0 %374
        %vm376 = vcmask 359424
        %v377 = vsel %vm376, %v365, %v367
        %v378 = vsel %vm376, %v367, %v369
        %v379 = vsel %vm376, %v371, %v373
        %v380 = vsel %vm376, %v373, %v375
        %386 = vset.pattern.permute.xlu0 0
        %387 = vperm.xlu0 %386, %v204
        %v388 = vpop.permute.xlu0 %387
        %vm390 = vcmask 130048
        %v392 = vsel %vm390, %v203, 0
        %394 = vmatprep.subr.mxu0 %v359
        %395 = vmatpush1.msra.mxu0 %v358
        %396 = vmatprep.subr.mxu0 %v357
        %397 = vmatpush1.msra.mxu0 %v356
        %398 = vmatprep.subr.mxu0 %v338
        %399 = vmatpush1.msra.mxu0 %v337
        %400 = vmatprep.subr.mxu0 %v336
        %401 = vmatpush1.msra.mxu0 %v335
        %402 = vmatprep.subr.mxu0 %v317
        %403 = vmatpush1.msra.mxu0 %v316
        %404 = vmatprep.subr.mxu0 %v315
        %405 = vmatpush1.msra.mxu0 %v314
        %406 = vmatprep.subr.mxu0 %v296
        %407 = vmatpush1.msra.mxu0 %v295
        %408 = vmatprep.subr.mxu0 %v294
        %409 = vmatpush1.msra.mxu0 %v293
        %410 = vmatprep.subr.mxu0 %v275
        %411 = vmatpush1.msra.mxu0 %v274
        %412 = vmatprep.subr.mxu0 %v273
        %413 = vmatpush1.msra.mxu0 %v272
        %414 = vmatprep.subr.mxu0 %v254
        %415 = vmatpush1.msra.mxu0 %v253
        %416 = vmatprep.subr.mxu0 %v252
        %417 = vmatpush1.msra.mxu0 %v251
        %418 = vmatprep.subr.mxu0 %v233
        %419 = vmatpush1.msra.mxu0 %v232
        %420 = vmatprep.subr.mxu0 %v231
        %421 = vmatpush1.msra.mxu0 %v230
        %422 = vmatprep.subr.mxu0 %v208
        %423 = vmatpush1.msra.mxu0 %v207
        %424 = vmatprep.subr.mxu0 %v206
        %425 = vmatpush1.msra.mxu0 %v205
        %426 = vmatprep.subr.mxu0 0.0
        %427 = vmatpush2.msra.mxu0 0.0
        %428 = vmatprep.subr.mxu0 0.0
        %429 = vmatpush2.msra.mxu0 0.0
        %430 = vmatprep.subr.mxu0 0.0
        %431 = vmatpush2.msra.mxu0 0.0
        %432 = vmatprep.subr.mxu0 0.0
        %433 = vmatpush2.msra.mxu0 0.0
        %434 = vmatprep.subr.mxu0 0.0
        %435 = vmatpush2.msra.mxu0 0.0
        %436 = vmatprep.subr.mxu0 0.0
        %437 = vmatpush2.msra.mxu0 0.0
        %438 = vmatprep.subr.mxu0 0.0
        %439 = vmatpush2.msra.mxu0 0.0
        %440 = vmatprep.subr.mxu0 0.0
        %441 = vmatpush2.msra.mxu0 0.0
        %442 = vmatprep.subr.mxu0 0.0
        %443 = vmatpush2.msra.mxu0 0.0
        %444 = vmatprep.subr.mxu0 0.0
        %445 = vmatpush2.msra.mxu0 0.0
        %446 = vmatprep.subr.mxu0 0.0
        %447 = vmatpush2.msra.mxu0 0.0
        %448 = vmatprep.subr.mxu0 0.0
        %449 = vmatpush2.msra.mxu0 0.0
        %450 = vmatprep.subr.mxu0 0.0
        %451 = vmatpush2.msra.mxu0 0.0
        %452 = vmatprep.subr.mxu0 0.0
        %453 = vmatpush2.msra.mxu0 0.0
        %454 = vmatprep.subr.mxu0 %v380
        %455 = vmatpush2.msra.mxu0 %v379
        %456 = vmatprep.subr.mxu0 %v378
        %457 = vmatpush2.msra.mxu0 %v377
        %458 = vmatprep.mubr.f32.mxu0 %v392
        %459 = vmatmul.mubr.f32.gmra.mxu0 %v202
        %v460 = vpop.f32.mrf.mxu0
        %v461 = vadd.f32 %v388, %v460
        %v462 = vpop.f32.mrf.mxu0
        %v463 = vadd.f32 %v388, %v462
        %464 = vdwg.mxu0
        %465 = vst [vmem:[%s201] sm:$0xff] %v461
        %466 = vst [vmem:[%s201 + $0x8] sm:$0xff] %v463
        %v467 = vld [vmem:[%s175 + $0x10] sm:$0xff]
        %v468 = vld [vmem:[%s175 + $0x18] sm:$0xff]
        %v469 = vld [vmem:[%s175 + $0x38] sm:$0xff]
        %v470 = vld [vmem:[%s175 + $0x40] sm:$0xff]
        %v471 = vld [vmem:[%s175 + $0x10] sm:$0xff]
        %v472 = vld [vmem:[%s175 + $0x18] sm:$0xff]
        %v473 = vld [vmem:[%s175 + $0x20] sm:$0xff]
        %v474 = vld [vmem:[%s175 + $0x38] sm:$0xff]
        %v475 = vld [vmem:[%s175 + $0x40] sm:$0xff]
        %v476 = vld [vmem:[%s175 + $0x48] sm:$0xff]
        %483 = vrot.lane.b32.xlu0 %v471, 126
        %v484 = vpop.permute.xlu0 %483
        %485 = vrot.lane.b32.xlu0 %v472, 126
        %v486 = vpop.permute.xlu0 %485
        %487 = vrot.lane.b32.xlu0 %v473, 126
        %v488 = vpop.permute.xlu0 %487
        %489 = vrot.lane.b32.xlu0 %v474, 126
        %v490 = vpop.permute.xlu0 %489
        %491 = vrot.lane.b32.xlu0 %v475, 126
        %v492 = vpop.permute.xlu0 %491
        %493 = vrot.lane.b32.xlu0 %v476, 126
        %v494 = vpop.permute.xlu0 %493
        %v495 = vsel %vm229, %v484, %v486
        %v496 = vsel %vm229, %v486, %v488
        %v497 = vsel %vm229, %v490, %v492
        %v498 = vsel %vm229, %v492, %v494
        %503 = vrot.lane.b32.xlu0 %v471, 124
        %v504 = vpop.permute.xlu0 %503
        %505 = vrot.lane.b32.xlu0 %v472, 124
        %v506 = vpop.permute.xlu0 %505
        %507 = vrot.lane.b32.xlu0 %v473, 124
        %v508 = vpop.permute.xlu0 %507
        %509 = vrot.lane.b32.xlu0 %v474, 124
        %v510 = vpop.permute.xlu0 %509
        %511 = vrot.lane.b32.xlu0 %v475, 124
        %v512 = vpop.permute.xlu0 %511
        %513 = vrot.lane.b32.xlu0 %v476, 124
        %v514 = vpop.permute.xlu0 %513
        %v515 = vsel %vm250, %v504, %v506
        %v516 = vsel %vm250, %v506, %v508
        %v517 = vsel %vm250, %v510, %v512
        %v518 = vsel %vm250, %v512, %v514
        %523 = vrot.lane.b32.xlu0 %v471, 88
        %v524 = vpop.permute.xlu0 %523
        %525 = vrot.lane.b32.xlu0 %v472, 88
        %v526 = vpop.permute.xlu0 %525
        %527 = vrot.lane.b32.xlu0 %v473, 88
        %v528 = vpop.permute.xlu0 %527
        %529 = vrot.lane.b32.xlu0 %v474, 88
        %v530 = vpop.permute.xlu0 %529
        %531 = vrot.lane.b32.xlu0 %v475, 88
        %v532 = vpop.permute.xlu0 %531
        %533 = vrot.lane.b32.xlu0 %v476, 88
        %v534 = vpop.permute.xlu0 %533
        %v535 = vsel %vm271, %v524, %v526
        %v536 = vsel %vm271, %v526, %v528
        %v537 = vsel %vm271, %v530, %v532
        %v538 = vsel %vm271, %v532, %v534
        %543 = vrot.lane.b32.xlu0 %v471, 86
        %v544 = vpop.permute.xlu0 %543
        %545 = vrot.lane.b32.xlu0 %v472, 86
        %v546 = vpop.permute.xlu0 %545
        %547 = vrot.lane.b32.xlu0 %v473, 86
        %v548 = vpop.permute.xlu0 %547
        %549 = vrot.lane.b32.xlu0 %v474, 86
        %v550 = vpop.permute.xlu0 %549
        %551 = vrot.lane.b32.xlu0 %v475, 86
        %v552 = vpop.permute.xlu0 %551
        %553 = vrot.lane.b32.xlu0 %v476, 86
        %v554 = vpop.permute.xlu0 %553
        %v555 = vsel %vm292, %v544, %v546
        %v556 = vsel %vm292, %v546, %v548
        %v557 = vsel %vm292, %v550, %v552
        %v558 = vsel %vm292, %v552, %v554
        %563 = vrot.lane.b32.xlu0 %v471, 84
        %v564 = vpop.permute.xlu0 %563
        %565 = vrot.lane.b32.xlu0 %v472, 84
        %v566 = vpop.permute.xlu0 %565
        %567 = vrot.lane.b32.xlu0 %v473, 84
        %v568 = vpop.permute.xlu0 %567
        %569 = vrot.lane.b32.xlu0 %v474, 84
        %v570 = vpop.permute.xlu0 %569
        %571 = vrot.lane.b32.xlu0 %v475, 84
        %v572 = vpop.permute.xlu0 %571
        %573 = vrot.lane.b32.xlu0 %v476, 84
        %v574 = vpop.permute.xlu0 %573
        %v575 = vsel %vm313, %v564, %v566
        %v576 = vsel %vm313, %v566, %v568
        %v577 = vsel %vm313, %v570, %v572
        %v578 = vsel %vm313, %v572, %v574
        %583 = vrot.lane.b32.xlu0 %v471, 48
        %v584 = vpop.permute.xlu0 %583
        %585 = vrot.lane.b32.xlu0 %v472, 48
        %v586 = vpop.permute.xlu0 %585
        %587 = vrot.lane.b32.xlu0 %v473, 48
        %v588 = vpop.permute.xlu0 %587
        %589 = vrot.lane.b32.xlu0 %v474, 48
        %v590 = vpop.permute.xlu0 %589
        %591 = vrot.lane.b32.xlu0 %v475, 48
        %v592 = vpop.permute.xlu0 %591
        %593 = vrot.lane.b32.xlu0 %v476, 48
        %v594 = vpop.permute.xlu0 %593
        %v595 = vsel %vm334, %v584, %v586
        %v596 = vsel %vm334, %v586, %v588
        %v597 = vsel %vm334, %v590, %v592
        %v598 = vsel %vm334, %v592, %v594
        %603 = vrot.lane.b32.xlu0 %v471, 46
        %v604 = vpop.permute.xlu0 %603
        %605 = vrot.lane.b32.xlu0 %v472, 46
        %v606 = vpop.permute.xlu0 %605
        %607 = vrot.lane.b32.xlu0 %v473, 46
        %v608 = vpop.permute.xlu0 %607
        %609 = vrot.lane.b32.xlu0 %v474, 46
        %v610 = vpop.permute.xlu0 %609
        %611 = vrot.lane.b32.xlu0 %v475, 46
        %v612 = vpop.permute.xlu0 %611
        %613 = vrot.lane.b32.xlu0 %v476, 46
        %v614 = vpop.permute.xlu0 %613
        %v615 = vsel %vm355, %v604, %v606
        %v616 = vsel %vm355, %v606, %v608
        %v617 = vsel %vm355, %v610, %v612
        %v618 = vsel %vm355, %v612, %v614
        %623 = vrot.lane.b32.xlu0 %v471, 44
        %v624 = vpop.permute.xlu0 %623
        %625 = vrot.lane.b32.xlu0 %v472, 44
        %v626 = vpop.permute.xlu0 %625
        %627 = vrot.lane.b32.xlu0 %v473, 44
        %v628 = vpop.permute.xlu0 %627
        %629 = vrot.lane.b32.xlu0 %v474, 44
        %v630 = vpop.permute.xlu0 %629
        %631 = vrot.lane.b32.xlu0 %v475, 44
        %v632 = vpop.permute.xlu0 %631
        %633 = vrot.lane.b32.xlu0 %v476, 44
        %v634 = vpop.permute.xlu0 %633
        %v635 = vsel %vm376, %v624, %v626
        %v636 = vsel %vm376, %v626, %v628
        %v637 = vsel %vm376, %v630, %v632
        %v638 = vsel %vm376, %v632, %v634
        %643 = vmatprep.subr.mxu0 %v618
        %644 = vmatpush1.msra.mxu0 %v617
        %645 = vmatprep.subr.mxu0 %v616
        %646 = vmatpush1.msra.mxu0 %v615
        %647 = vmatprep.subr.mxu0 %v598
        %648 = vmatpush1.msra.mxu0 %v597
        %649 = vmatprep.subr.mxu0 %v596
        %650 = vmatpush1.msra.mxu0 %v595
        %651 = vmatprep.subr.mxu0 %v578
        %652 = vmatpush1.msra.mxu0 %v577
        %653 = vmatprep.subr.mxu0 %v576
        %654 = vmatpush1.msra.mxu0 %v575
        %655 = vmatprep.subr.mxu0 %v558
        %656 = vmatpush1.msra.mxu0 %v557
        %657 = vmatprep.subr.mxu0 %v556
        %658 = vmatpush1.msra.mxu0 %v555
        %659 = vmatprep.subr.mxu0 %v538
        %660 = vmatpush1.msra.mxu0 %v537
        %661 = vmatprep.subr.mxu0 %v536
        %662 = vmatpush1.msra.mxu0 %v535
        %663 = vmatprep.subr.mxu0 %v518
        %664 = vmatpush1.msra.mxu0 %v517
        %665 = vmatprep.subr.mxu0 %v516
        %666 = vmatpush1.msra.mxu0 %v515
        %667 = vmatprep.subr.mxu0 %v498
        %668 = vmatpush1.msra.mxu0 %v497
        %669 = vmatprep.subr.mxu0 %v496
        %670 = vmatpush1.msra.mxu0 %v495
        %671 = vmatprep.subr.mxu0 %v470
        %672 = vmatpush1.msra.mxu0 %v469
        %673 = vmatprep.subr.mxu0 %v468
        %674 = vmatpush1.msra.mxu0 %v467
        %675 = vmatprep.subr.mxu0 0.0
        %676 = vmatpush2.msra.mxu0 0.0
        %677 = vmatprep.subr.mxu0 0.0
        %678 = vmatpush2.msra.mxu0 0.0
        %679 = vmatprep.subr.mxu0 0.0
        %680 = vmatpush2.msra.mxu0 0.0
        %681 = vmatprep.subr.mxu0 0.0
        %682 = vmatpush2.msra.mxu0 0.0
        %683 = vmatprep.subr.mxu0 0.0
        %684 = vmatpush2.msra.mxu0 0.0
        %685 = vmatprep.subr.mxu0 0.0
        %686 = vmatpush2.msra.mxu0 0.0
        %687 = vmatprep.subr.mxu0 0.0
        %688 = vmatpush2.msra.mxu0 0.0
        %689 = vmatprep.subr.mxu0 0.0
        %690 = vmatpush2.msra.mxu0 0.0
        %691 = vmatprep.subr.mxu0 0.0
        %692 = vmatpush2.msra.mxu0 0.0
        %693 = vmatprep.subr.mxu0 0.0
        %694 = vmatpush2.msra.mxu0 0.0
        %695 = vmatprep.subr.mxu0 0.0
        %696 = vmatpush2.msra.mxu0 0.0
        %697 = vmatprep.subr.mxu0 0.0
        %698 = vmatpush2.msra.mxu0 0.0
        %699 = vmatprep.subr.mxu0 0.0
        %700 = vmatpush2.msra.mxu0 0.0
        %701 = vmatprep.subr.mxu0 0.0
        %702 = vmatpush2.msra.mxu0 0.0
        %703 = vmatprep.subr.mxu0 %v638
        %704 = vmatpush2.msra.mxu0 %v637
        %705 = vmatprep.subr.mxu0 %v636
        %706 = vmatpush2.msra.mxu0 %v635
        %707 = vmatprep.mubr.f32.mxu0 %v392
        %708 = vmatmul.mubr.f32.gmra.mxu0 %v202
        %v709 = vpop.f32.mrf.mxu0
        %v710 = vadd.f32 %v388, %v709
        %v711 = vpop.f32.mrf.mxu0
        %v712 = vadd.f32 %v388, %v711
        %713 = vdwg.mxu0
        %714 = vst [vmem:[%s201 + $0x10] sm:$0xff] %v710
        %715 = vst [vmem:[%s201 + $0x18] sm:$0xff] %v712
        %s716 = sand.u32 %s97, 1
        %s717 = scalar_lea.sflag [#allocation4], %s716
        %s718 = sand.u32 %s97, 1
        %s719 = smul.addr %s718, 32
        %s720 = scalar_lea.vmem [#allocation7], %s719
        // Predicated region
        $region41: #{tpu_custom_call.1} parent=31 // pred_check
          %p721 = pneg %p107
        $region42: #{tpu_custom_call.1} parent=31 // pred_check_branch
          %723 = sbr.rel (%p721) target = $region44
        $region43: #{tpu_custom_call.1} parent=31 // pred_region
          %s725 = ssub.s32 512, 512
          %726 = vsyncadd %s717, %s725
          %s727 = smul.addr %s21, 4
          %s728 = smul.addr %s727, 128
          %s729 = scalar_lea.hbm %s3, %s728
          %s731 = sshll.u32 %s720, 4
          %s732 = int_to_ptr.vmem [resolvable:$true] %s731
          %734 = dma.vmem_to_hbm [thread:$0]  %s732, 512, %s729, %s717
        $region44: #{tpu_custom_call.1} parent=31 // pred_fallthru
          _
      $region32: #{tpu_custom_call.1} parent=5 // pred_fallthru
        _
      %p735 = scmp.le.s32.totalorder 2, %s16
      // Predicated region
      $region45: #{tpu_custom_call.1} parent=5 // pred_check
        %p736 = pneg %p735
      $region46: #{tpu_custom_call.1} parent=5 // pred_check_branch
        %738 = sbr.rel (%p736) target = $region48
      $region47: #{tpu_custom_call.1} parent=5 // pred_region
        %s739 = ssub.s32 %s16, 2
        // Predicated region
        $region49: #{tpu_custom_call.1} parent=47 // pred_check
          %p740 = pneg %p113
        $region50: #{tpu_custom_call.1} parent=47 // pred_check_branch
          %742 = sbr.rel (%p740) target = $region52
        $region51: #{tpu_custom_call.1} parent=47 // pred_region
          %s743 = sand.u32 %s98, 1
          %s744 = scalar_lea.sflag [#allocation4], %s743
          %s745 = sand.u32 %s98, 1
          %s746 = smul.addr %s745, 32
          %s747 = scalar_lea.vmem [#allocation7], %s746
          %748 = dma.done %s744, 512
        $region52: #{tpu_custom_call.1} parent=47 // pred_fallthru
          _
      $region48: #{tpu_custom_call.1} parent=5 // pred_fallthru
        _
    $region6: #{tpu_custom_call.1} parent=1 // loop_footer
      %s20 = sadd.s32 1, %s16
    $region7: #{tpu_custom_call.1} parent=1 // loop_footer_branch
      %15 = sbr.rel target = $region3
    $region8: #{tpu_custom_call.1} parent=1 // loop_exit
      _
    %749 = vsyncpa [#allocation3], 1
    %s750 = scalar_lea.sflag [#allocation3], 1
    %751 = vsyncpa %s750, 1
    %752 = vsyncpa [#allocation6], 1
    %753 = vsyncpa [#allocation4], 1
    %s754 = scalar_lea.sflag [#allocation4], 1
    %755 = vsyncpa %s754, 1

</llo_original>
